<compile_context>
chip_gen: v5e
topology: v5e:2x2
jax: 0.10.0
libtpu: 0.0.40
codegen_flags: <defaults>
</compile_context>

<pallas_src>
from typing import NamedTuple, Optional

import jax
import jax.numpy as jnp
from jax.experimental import pallas as pl
from jax.experimental.pallas import tpu as pltpu


# ----------------------------- kernels --------------------------------------


def _linear_relu_kernel(x_ref, w_ref, b_ref, o_ref, acc_ref):
    """K-tiled matmul + bias + ReLU with an f32 VMEM accumulator (grid axis 2 = K)."""
    k = pl.program_id(2)

    @pl.when(k == 0)
    def _init():
        acc_ref[...] = jnp.zeros_like(acc_ref)

    acc_ref[...] += jnp.dot(x_ref[...], w_ref[...],
                            preferred_element_type=jnp.float32)

    @pl.when(k == pl.num_programs(2) - 1)
    def _finalize():
        y = acc_ref[...] + b_ref[...].astype(jnp.float32)
        o_ref[...] = jnp.maximum(y, 0.0).astype(o_ref.dtype)


def _linear_relu_kernel_single_k(x_ref, w_ref, b_ref, o_ref):
    """Single-K-tile fast path: no accumulator scratch, no pl.when branches."""
    y = jnp.dot(x_ref[...], w_ref[...], preferred_element_type=jnp.float32)
    y = y + b_ref[...].astype(jnp.float32)
    o_ref[...] = jnp.maximum(y, 0.0).astype(o_ref.dtype)


# ----------------------------- helpers ---------------------------------------


def _round_up(x, m):
    return (x + m - 1) // m * m


def _sublane_granule(dtype):
    # Sub-32-bit dtypes pack along sublanes: bf16 needs 16 rows, int8/fp8 32.
    return {4: 8, 2: 16, 1: 32}.get(jnp.dtype(dtype).itemsize, 8)


def _pick_tile(dim, granule, cap):
    """Tile (multiple of `granule`, <= cap) minimizing (num_blocks, padding)."""
    cap = max(cap, granule)
    best = None
    for c in range(granule, cap + 1, granule):
        nblk = -(-dim // c)
        pad = nblk * c - dim
        key = (nblk, pad, -c)
        if best is None or key < best[0]:
            best = (key, c)
    return best[1]


def _vmem_limit_bytes():
    # Generation-aware budget: ~3/4 of physical VMEM, capped at 100 MiB
    # (v5e/v6e: 128 MiB -> 96 MiB; v7x: 64 MiB -> 48 MiB). 48 MiB fallback is
    # safe on every current generation.
    try:
        phys = pltpu.get_tpu_info().vmem_capacity_bytes
        return int(min(100 * 1024 * 1024, phys * 3 // 4))
    except Exception:
        return 48 * 1024 * 1024


# ----------------------------- parameter prep (once per model) ---------------


class LinearParams(NamedTuple):
    w_p: jax.Array          # (K_pad, N_pad) padded, cast to compute dtype
    b_p: jax.Array          # (1, N_pad) float32
    in_features: int
    out_features: int
    tn: int
    tk: int


def prepare_linear(weight_t, bias, *, compute_dtype: Optional[jnp.dtype] = None,
                   block_n: Optional[int] = None,
                   block_k: Optional[int] = None) -> LinearParams:
    """Pad + cast the (in_features, out_features) weight and bias ONCE.

    weight_t is the PyTorch weight transposed to (in_features, out_features).
    compute_dtype (e.g. jnp.bfloat16) selects the MXU operand dtype; f32
    accumulation always happens inside the kernel.
    """
    K, N = weight_t.shape
    w_c = weight_t if compute_dtype is None else weight_t.astype(compute_dtype)
    cap_k = 2048 if jnp.dtype(w_c.dtype).itemsize < 4 else 1024
    tn = block_n if block_n is not None else _pick_tile(N, 128, 512)
    tk = block_k if block_k is not None else _pick_tile(K, 128, cap_k)
    K_pad, N_pad = _round_up(K, tk), _round_up(N, tn)
    if (K_pad, N_pad) != (K, N):
        w_c = jnp.pad(w_c, ((0, K_pad - K), (0, N_pad - N)))
    b_p = bias.reshape(1, N).astype(jnp.float32)
    if N_pad != N:
        b_p = jnp.pad(b_p, ((0, 0), (0, N_pad - N)))
    return LinearParams(w_c, b_p, K, N, tn, tk)


# ----------------------------- forward ---------------------------------------


def linear_forward(x, params: LinearParams, *, is_residual=False,
                   out_dtype=None, block_m: Optional[int] = None):
    """Pallas equivalent of Linear.forward (ReLU activation, dropout=0, no norm)."""
    B, K = x.shape
    assert K == params.in_features, (K, params.in_features)
    N = params.out_features
    w_p, b_p = params.w_p, params.b_p
    K_pad, N_pad = w_p.shape
    tn, tk = params.tn, params.tk
    out_dtype = out_dtype if out_dtype is not None else x.dtype

    compute_dtype = w_p.dtype
    x_c = x if x.dtype == compute_dtype else x.astype(compute_dtype)

    granule_m = _sublane_granule(compute_dtype)
    tm = block_m if block_m is not None else _pick_tile(B, granule_m, 512)
    M_pad = _round_up(B, tm)

    # v7x megacore: make sure the "parallel" (i, j) grid has >= 2 tiles so
    # both TensorCores get work (cheap no-op on single-TC v5e/v6e).
    if block_m is None and (M_pad // tm) * (N_pad // tn) == 1:
        if tn % 256 == 0:
            tn //= 2
        elif tm % (2 * granule_m) == 0:
            tm //= 2

    x_p = x_c
    if (M_pad, K_pad) != (B, K):
        x_p = jnp.pad(x_c, ((0, M_pad - B), (0, K_pad - K)))

    grid_m, grid_n, kt = M_pad // tm, N_pad // tn, K_pad // tk

    item_in = jnp.dtype(compute_dtype).itemsize
    item_out = jnp.dtype(out_dtype).itemsize
    cost = pl.CostEstimate(
        flops=2 * M_pad * K_pad * N_pad,
        transcendentals=0,
        bytes_accessed=int(M_pad * K_pad * item_in + K_pad * N_pad * item_in
                           + N_pad * 4 + M_pad * N_pad * item_out),
    )
    vmem_limit = _vmem_limit_bytes()

    if kt == 1:
        # Single K tile: 2-D grid, no accumulator scratch / branches.
        out = pl.pallas_call(
            _linear_relu_kernel_single_k,
            out_shape=jax.ShapeDtypeStruct((M_pad, N_pad), out_dtype),
            grid_spec=pltpu.PrefetchScalarGridSpec(
                num_scalar_prefetch=0,
                grid=(grid_m, grid_n),
                in_specs=[
                    pl.BlockSpec((tm, K_pad), lambda i, j: (i, 0)),
                    pl.BlockSpec((K_pad, tn), lambda i, j: (0, j)),
                    pl.BlockSpec((1, tn), lambda i, j: (0, j)),
                ],
                out_specs=pl.BlockSpec((tm, tn), lambda i, j: (i, j)),
            ),
            compiler_params=pltpu.CompilerParams(
                dimension_semantics=("parallel", "parallel"),
                vmem_limit_bytes=vmem_limit),
            cost_estimate=cost,
        )(x_p, w_p, b_p)
    else:
        out = pl.pallas_call(
            _linear_relu_kernel,
            out_shape=jax.ShapeDtypeStruct((M_pad, N_pad), out_dtype),
            grid_spec=pltpu.PrefetchScalarGridSpec(
                num_scalar_prefetch=0,
                grid=(grid_m, grid_n, kt),
                in_specs=[
                    pl.BlockSpec((tm, tk), lambda i, j, k: (i, k)),
                    pl.BlockSpec((tk, tn), lambda i, j, k: (k, j)),
                    pl.BlockSpec((1, tn), lambda i, j, k: (0, j)),
                ],
                out_specs=pl.BlockSpec((tm, tn), lambda i, j, k: (i, j)),
                scratch_shapes=[pltpu.VMEM((tm, tn), jnp.float32)],
            ),
            compiler_params=pltpu.CompilerParams(
                dimension_semantics=("parallel", "parallel", "arbitrary"),
                vmem_limit_bytes=vmem_limit),
            cost_estimate=cost,
        )(x_p, w_p, b_p)

    y = out[:B, :N]
    # dropout_rate = 0.0 -> identity; use_norm = False -> no BatchNorm1d.
    if is_residual:
        y = jnp.concatenate([x, y.astype(x.dtype)], axis=-1)
    return y


def linear(x, weight_t, bias, *, compute_dtype=None, block_m=None,
           block_n=None, block_k=None, **fwd_kwargs):
    """One-shot convenience wrapper (pads/casts the weight on every call —
    prefer prepare_linear + linear_forward when weights are reused)."""
    params = prepare_linear(weight_t, bias, compute_dtype=compute_dtype,
                            block_n=block_n, block_k=block_k)
    return linear_forward(x, params, block_m=block_m, **fwd_kwargs)


# ----------------------------- demo / checks ---------------------------------


if __name__ == "__main__":
    key = jax.random.PRNGKey(0)

    def make_inputs(k, batch, in_f, out_f):
        kx, kw, kb = jax.random.split(k, 3)
        bound = 1.0 / (in_f ** 0.5)
        x = jax.random.normal(kx, (batch, in_f), dtype=jnp.float32)
        # PyTorch weight is (out, in); store transposed (in, out) for the kernel.
        w_t = jax.random.uniform(kw, (in_f, out_f), dtype=jnp.float32,
                                 minval=-bound, maxval=bound)
        b = jax.random.uniform(kb, (out_f,), dtype=jnp.float32,
                               minval=-bound, maxval=bound)
        return x, w_t, b

    def reference(x, w_t, b, is_residual=False):
        y = jnp.maximum(
            jnp.dot(x, w_t, precision=jax.lax.Precision.HIGHEST) + b, 0.0)
        if is_residual:
            y = jnp.concatenate([x, y], axis=-1)
        return y

    def check(name, got, want, atol, rtol):
        got = jax.block_until_ready(got)
        assert got.shape == want.shape, (name, got.shape, want.shape)
        err = float(jnp.max(jnp.abs(got.astype(jnp.float32) - want)))
        assert bool(jnp.allclose(got.astype(jnp.float32), want,
                                 atol=atol, rtol=rtol)), \
            f"{name}: max abs err {err}"

    k1, k2 = jax.random.split(key)

    # 1) Lane-aligned shapes. Default tiling -> kt==1 fast path (no scratch),
    #    megacore split gives a (1, 2) parallel grid.
    x, w_t, b = make_inputs(k1, 8, 256, 256)
    params_f32 = prepare_linear(w_t, b)
    ref = reference(x, w_t, b)
    out = linear_forward(x, params_f32)
    check("linear f32 (kt==1 path)", out, ref, atol=1e-2, rtol=1e-2)

    # Residual concat (done outside the matmul kernel).
    ref_res = reference(x, w_t, b, is_residual=True)
    out_res = linear_forward(x, params_f32, is_residual=True)
    check("linear f32 residual", out_res, ref_res, atol=1e-2, rtol=1e-2)

    # 2) Forced 128-wide N/K tiles -> exercises the K-tiled accumulator path.
    params_kt = prepare_linear(w_t, b, block_n=128, block_k=128)
    out_kt = linear_forward(x, params_kt)
    check("linear f32 (K-tiled accumulator)", out_kt, ref, atol=1e-2, rtol=1e-2)

    # 3) bf16 operands (v6e/v7x MXU fast path), f32 accumulation in-kernel;
    #    weight cast/pad done once in prepare_linear.
    params_bf16 = prepare_linear(w_t, b, compute_dtype=jnp.bfloat16)
    out_bf16 = linear_forward(x, params_bf16)
    check("linear bf16 operands", out_bf16, ref, atol=6e-2, rtol=6e-2)

    # bf16 output option (halves store traffic when downstream accepts it).
    out_bf16_o = linear_forward(x, params_bf16, out_dtype=jnp.bfloat16)
    check("linear bf16 out", out_bf16_o, ref, atol=8e-2, rtol=8e-2)

    # 4) Ragged shapes -> padding to lane-dense 128-multiples; residual concat.
    x2, w2, b2 = make_inputs(k2, 5, 96, 40)
    ref2 = reference(x2, w2, b2, is_residual=True)
    out2 = linear(x2, w2, b2, is_residual=True)
    check("linear f32 padded + residual", out2, ref2, atol=1e-2, rtol=1e-2)

    print("KERNEL_OK")
</pallas_src>

<mosaic_0001>
module attributes {stable_mosaic.version = 11 : i64} {
  func.func @_linear_relu_kernel_single_k(%arg0: i32, %arg1: i32, %arg2: memref<8x256xf32, #tpu.memory_space<vmem>>, %arg3: memref<256x128xf32, #tpu.memory_space<vmem>>, %arg4: memref<1x128xf32, #tpu.memory_space<vmem>>, %arg5: memref<8x128xf32, #tpu.memory_space<vmem>>) attributes {dimension_semantics = [#tpu.dimension_semantics<parallel>, #tpu.dimension_semantics<parallel>], iteration_bounds = array<i64: 1, 2>, scalar_prefetch = 0 : i64, scratch_operands = 0 : i64, tpu.core_type = #tpu.core_type<tc>, window_params = [{transform_indices = @transform_0, window_bounds = array<i64: 8, 256>}, {transform_indices = @transform_1, window_bounds = array<i64: 256, 128>}, {transform_indices = @transform_2, window_bounds = array<i64: 1, 128>}, {transform_indices = @transform_3, window_bounds = array<i64: 8, 128>}]} {
    %c0 = arith.constant 0 : index
    %c0_0 = arith.constant 0 : index
    %0 = vector.load %arg2[%c0, %c0_0] : memref<8x256xf32, #tpu.memory_space<vmem>>, vector<8x256xf32>
    %c0_1 = arith.constant 0 : index
    %c0_2 = arith.constant 0 : index
    %1 = vector.load %arg3[%c0_1, %c0_2] : memref<256x128xf32, #tpu.memory_space<vmem>>, vector<256x128xf32>
    %cst = arith.constant dense<0.000000e+00> : vector<8x128xf32>
    %2 = tpu.matmul %0, %1, %cst {dimension_numbers = #tpu.dot_dimension_numbers<[1], [0], [0], [1], [0, 0, 1, 1], [], []>} : vector<8x256xf32>, vector<256x128xf32>, vector<8x128xf32> -> vector<8x128xf32>
    %c0_3 = arith.constant 0 : index
    %c0_4 = arith.constant 0 : index
    %3 = vector.load %arg4[%c0_3, %c0_4] : memref<1x128xf32, #tpu.memory_space<vmem>>, vector<1x128xf32>
    %4 = vector.broadcast %3 : vector<1x128xf32> to vector<8x128xf32>
    %5 = arith.addf %2, %4 : vector<8x128xf32>
    %cst_5 = arith.constant 0.000000e+00 : f32
    %6 = vector.broadcast %cst_5 : f32 to vector<8x128xf32>
    %7 = arith.maximumf %5, %6 : vector<8x128xf32>
    %c0_6 = arith.constant 0 : index
    %c0_7 = arith.constant 0 : index
    %8 = vector.load %arg5[%c0_6, %c0_7] : memref<8x128xf32, #tpu.memory_space<vmem>>, vector<8x128xf32>
    tpu.vector_store %arg5[%c0_6, %c0_7], %7 {strides = array<i32>} : memref<8x128xf32, #tpu.memory_space<vmem>>, vector<8x128xf32>,
    return
  }
  func.func @transform_0(%arg0: i32, %arg1: i32) -> (i32, i32) {
    %c0_i32 = arith.constant 0 : i32
    %c0_i32_0 = arith.constant 0 : i32
    return %arg0, %c0_i32 : i32, i32
  }
  func.func @transform_1(%arg0: i32, %arg1: i32) -> (i32, i32) {
    %c0_i32 = arith.constant 0 : i32
    %c0_i32_0 = arith.constant 0 : i32
    return %c0_i32, %arg1 : i32, i32
  }
  func.func @transform_2(%arg0: i32, %arg1: i32) -> (i32, i32) {
    %c0_i32 = arith.constant 0 : i32
    %c0_i32_0 = arith.constant 0 : i32
    return %c0_i32, %arg1 : i32, i32
  }
  func.func @transform_3(%arg0: i32, %arg1: i32) -> (i32, i32) {
    %c0_i32 = arith.constant 0 : i32
    return %arg0, %arg1 : i32, i32
  }
}

</mosaic_0001>

<llo_original>
// kernel: tpu_custom_call.1
$region0: #{tpu_custom_call.1}
  #allocation0 [shape = 'u32[]', space=smem, size = 0x4, offset = 0x4, fixed_abs, tag = 'smem constant byte address 0x4 - core index']
  #allocation1 [shape = 'u32[72,128]{1,0:T(1,128)}', space=vmem, size = 0x9000, scoped, tag = 'internal scratch']
  %s0 = inlined_call_operand.hbm [shape: f32[8,256], index: 0, kind: input, shape index: {}]
  %s1 = inlined_call_operand.hbm [shape: f32[256,256], index: 1, kind: input, shape index: {}]
  %s2 = inlined_call_operand.hbm [shape: f32[1,256], index: 2, kind: input, shape index: {}]
  %s3 = inlined_call_operand.hbm [shape: f32[8,256], index: 3, kind: output, shape index: {}]
  %s4 = sld [smem:[#allocation0]]
  $region57: #{tpu_custom_call.1} parent=0
    _
  %s6 = ssub.s32 1, %s4
  %s7 = scalar_select 0, %s6, %s4
  $region1: #{tpu_custom_call.1} parent=0
    #allocation2 [shape = 'u8[8192]{0}', space=vmem, size = 0x2000, scoped, tag = 'input window, operand 0, single buffered']
    #allocation3 [shape = 's32[2]{0}', space=sflag, size = 0x8, scoped, tag = 'scoped memory for tpu_custom_call.1']
    #allocation4 [shape = 's32[2]{0}', space=sflag, size = 0x8, scoped, tag = 'scoped memory for tpu_custom_call.1']
    #allocation5 [shape = 'u8[262144]{0}', space=vmem, size = 0x40000, scoped, tag = 'input window, operand 1']
    #allocation6 [shape = 's32[2]{0}', space=sflag, size = 0x8, scoped, tag = 'scoped memory for tpu_custom_call.1']
    #allocation7 [shape = 'u8[1024]{0}', space=vmem, size = 0x400, scoped, tag = 'input window, operand 2']
    #allocation8 [shape = 'u8[8192]{0}', space=vmem, size = 0x2000, scoped, tag = 'output window, operand 0']
    %8 = vsyncpa [#allocation3], 0
    %9 = vsyncpa [#allocation6], 0
    %s10 = scalar_lea.sflag [#allocation6], 1
    %11 = vsyncpa %s10, 0
    %12 = vsyncpa [#allocation4], 0
    %s13 = scalar_lea.sflag [#allocation4], 1
    %14 = vsyncpa %s13, 0
    loop: start=0, step=1, limit=4
    $region2: #{tpu_custom_call.1} parent=1 // loop_pre_header
      _
    $region3: #{tpu_custom_call.1} parent=1 // loop_header
      %s16 = sphi 0, %s20
      %p17 = scmp.ge.s32.totalorder %s16, 4
      %s23 = sphi 0, %s35
      %s24 = sphi 0, %s31
      %s25 = sphi 0, %s23
      %s26 = sphi 0, %s24
      %s27 = sphi 0, %s25
      %s28 = sphi 0, %s26
      %s38 = sphi 0, %s40
      %s41 = sphi 0, %s38
      %s42 = sphi 0, %s41
      %s58 = sphi 0, %s42
      %s64 = sphi 0, %s66
      %s67 = sphi 0, %s64
      %s68 = sphi 0, %s67
      %s84 = sphi 0, %s68
      %s90 = sphi 0, %s92
      %s93 = sphi 0, %s90
      %s94 = sphi 0, %s93
      %s110 = sphi 0, %s94
      %s118 = sphi 0, %s120
      %s121 = sphi 0, %s118
      %s122 = sphi 0, %s121
      %s138 = sphi 0, %s122
    $region4: #{tpu_custom_call.1} parent=1 // loop_header_branch
      %19 = sbr.rel (%p17) target = $region8
    $region5: #{tpu_custom_call.1} parent=1 // loop_body
      %s21 = ssub.s32 %s16, 1
      %s22 = ssub.s32 %s16, 2
      %s29 = sadd.s32 1, %s24
      %p30 = scmp.ge.s32.totalorder %s29, 2
      %s31 = scalar_select %p30, 0, %s29
      %s32 = sadd.s32 1, %s23
      %s33 = scalar_select %p30, %s32, %s23
      %p34 = scmp.ge.s32.totalorder %s33, 1
      %s35 = scalar_select %p34, 0, %s33
      %s36 = ssub.s32 %s23, %s35
      %p37 = scmp.eq.s32.totalorder %s36, 0
      %s39 = sadd.s32 %s38, 1
      %s40 = scalar_select %p37, %s38, %s39
      %p43 = pneg %p37
      %p44 = scmp.eq.s32.totalorder %s16, 1
      %p45 = por %p43, %p44
      %p46 = scmp.ne.s32.totalorder %s38, %s41
      %p47 = scmp.eq.s32.totalorder %s16, 0
      %p48 = por %p46, %p47
      %p49 = scmp.ne.s32.totalorder %s38, %s41
      %p50 = scmp.eq.s32.totalorder %s21, 1
      %p51 = por %p49, %p50
      %p52 = scmp.ne.s32.totalorder %s41, %s42
      %p53 = scmp.eq.s32.totalorder %s21, 0
      %p54 = por %p52, %p53
      %p55 = scmp.ne.s32.totalorder %s41, %s42
      %p56 = scmp.eq.s32.totalorder %s22, 1
      %p57 = por %p55, %p56
      %p59 = scmp.ne.s32.totalorder %s42, %s58
      %p60 = scmp.eq.s32.totalorder %s22, 0
      %p61 = por %p59, %p60
      %s62 = ssub.s32 %s24, %s31
      %p63 = scmp.eq.s32.totalorder %s62, 0
      %s65 = sadd.s32 %s64, 1
      %s66 = scalar_select %p63, %s64, %s65
      %p69 = pneg %p63
      %p70 = scmp.eq.s32.totalorder %s16, 1
      %p71 = por %p69, %p70
      %p72 = scmp.ne.s32.totalorder %s64, %s67
      %p73 = scmp.eq.s32.totalorder %s16, 0
      %p74 = por %p72, %p73
      %p75 = scmp.ne.s32.totalorder %s64, %s67
      %p76 = scmp.eq.s32.totalorder %s21, 1
      %p77 = por %p75, %p76
      %p78 = scmp.ne.s32.totalorder %s67, %s68
      %p79 = scmp.eq.s32.totalorder %s21, 0
      %p80 = por %p78, %p79
      %p81 = scmp.ne.s32.totalorder %s67, %s68
      %p82 = scmp.eq.s32.totalorder %s22, 1
      %p83 = por %p81, %p82
      %p85 = scmp.ne.s32.totalorder %s68, %s84
      %p86 = scmp.eq.s32.totalorder %s22, 0
      %p87 = por %p85, %p86
      %s88 = ssub.s32 %s24, %s31
      %p89 = scmp.eq.s32.totalorder %s88, 0
      %s91 = sadd.s32 %s90, 1
      %s92 = scalar_select %p89, %s90, %s91
      %p95 = pneg %p89
      %p96 = scmp.eq.s32.totalorder %s16, 1
      %p97 = por %p95, %p96
      %p98 = scmp.ne.s32.totalorder %s90, %s93
      %p99 = scmp.eq.s32.totalorder %s16, 0
      %p100 = por %p98, %p99
      %p101 = scmp.ne.s32.totalorder %s90, %s93
      %p102 = scmp.eq.s32.totalorder %s21, 1
      %p103 = por %p101, %p102
      %p104 = scmp.ne.s32.totalorder %s93, %s94
      %p105 = scmp.eq.s32.totalorder %s21, 0
      %p106 = por %p104, %p105
      %p107 = scmp.ne.s32.totalorder %s93, %s94
      %p108 = scmp.eq.s32.totalorder %s22, 1
      %p109 = por %p107, %p108
      %p111 = scmp.ne.s32.totalorder %s94, %s110
      %p112 = scmp.eq.s32.totalorder %s22, 0
      %p113 = por %p111, %p112
      %s114 = ssub.s32 %s23, %s35
      %s115 = ssub.s32 %s24, %s31
      %s116 = sor.u32 %s114, %s115
      %p117 = scmp.eq.s32.totalorder %s116, 0
      %s119 = sadd.s32 %s118, 1
      %s120 = scalar_select %p117, %s118, %s119
      %p123 = pneg %p117
      %p124 = scmp.eq.s32.totalorder %s16, 1
      %p125 = por %p123, %p124
      %p126 = scmp.ne.s32.totalorder %s118, %s121
      %p127 = scmp.eq.s32.totalorder %s16, 0
      %p128 = por %p126, %p127
      %p129 = scmp.ne.s32.totalorder %s118, %s121
      %p130 = scmp.eq.s32.totalorder %s21, 1
      %p131 = por %p129, %p130
      %p132 = scmp.ne.s32.totalorder %s121, %s122
      %p133 = scmp.eq.s32.totalorder %s21, 0
      %p134 = por %p132, %p133
      %p135 = scmp.ne.s32.totalorder %s121, %s122
      %p136 = scmp.eq.s32.totalorder %s22, 1
      %p137 = por %p135, %p136
      %p139 = scmp.ne.s32.totalorder %s122, %s138
      %p140 = scmp.eq.s32.totalorder %s22, 0
      %p141 = por %p139, %p140
      %p142 = scmp.le.s32.totalorder 1, %s16
      %p143 = scmp.lt.s32.totalorder %s16, 3
      %p144 = pnand %p142, %p143
      %p145 = pneg %p144
      // Predicated region
      $region9: #{tpu_custom_call.1} parent=5 // pred_check
        _
      $region10: #{tpu_custom_call.1} parent=5 // pred_check_branch
        %147 = sbr.rel (%p144) target = $region12
      $region11: #{tpu_custom_call.1} parent=5 // pred_region
        %s148 = ssub.s32 %s16, 1
        // Predicated region
        $region13: #{tpu_custom_call.1} parent=11 // pred_check
          %p149 = pneg %p54
        $region14: #{tpu_custom_call.1} parent=11 // pred_check_branch
          %151 = sbr.rel (%p149) target = $region16
        $region15: #{tpu_custom_call.1} parent=11 // pred_region
          %153 = vsyncadd [#allocation3], 0
          %s154 = smul.addr %s25, 2
          %s155 = smul.addr %s154, 8
          %s156 = scalar_lea.hbm %s0, %s155
          %s158 = sshll.u32 %s156, 4
          %s159 = int_to_ptr.hbm [resolvable:$true] %s158
          %s160 = sshll.u32 [#allocation2], 4
          %s161 = int_to_ptr.vmem [resolvable:$true] %s160
          %163 = dma.hbm_to_vmem [thread:$0]  %s159, 256, %s161, [#allocation3]
        $region16: #{tpu_custom_call.1} parent=11 // pred_fallthru
          _
      $region12: #{tpu_custom_call.1} parent=5 // pred_fallthru
        _
      %p164 = scmp.lt.s32.totalorder %s16, 2
      // Predicated region
      $region17: #{tpu_custom_call.1} parent=5 // pred_check
        %p165 = pneg %p164
      $region18: #{tpu_custom_call.1} parent=5 // pred_check_branch
        %167 = sbr.rel (%p165) target = $region20
      $region19: #{tpu_custom_call.1} parent=5 // pred_region
        // Predicated region
        $region21: #{tpu_custom_call.1} parent=19 // pred_check
          %p168 = pneg %p74
        $region22: #{tpu_custom_call.1} parent=19 // pred_check_branch
          %170 = sbr.rel (%p168) target = $region24
        $region23: #{tpu_custom_call.1} parent=19 // pred_region
          %s171 = sand.u32 %s16, 1
          %s172 = scalar_lea.sflag [#allocation6], %s171
          %s173 = sand.u32 %s64, 1
          %s174 = smul.addr %s173, 256
          %s175 = scalar_lea.vmem [#allocation5], %s174
          %177 = vsyncadd %s172, 0
          %s178 = smul.addr %s24, 8
          %s179 = scalar_lea.hbm %s1, %s178
          %s180 = sshll.u32 %s179, 4
          %s181 = int_to_ptr.hbm [resolvable:$true] %s180
          %s182 = sshll.u32 %s175, 4
          %s183 = int_to_ptr.vmem [resolvable:$true] %s182
          %188 = dma.hbm_to_vmem [thread:$0]  %s181, 4096, %s183, %s172, 256, 128, 8
        $region24: #{tpu_custom_call.1} parent=19 // pred_fallthru
          _
        // Predicated region
        $region25: #{tpu_custom_call.1} parent=19 // pred_check
          %p189 = pneg %p100
        $region26: #{tpu_custom_call.1} parent=19 // pred_check_branch
          %191 = sbr.rel (%p189) target = $region28
        $region27: #{tpu_custom_call.1} parent=19 // pred_region
          %s192 = sand.u32 %s16, 1
          %s193 = scalar_lea.sflag [#allocation6], %s192
          %s194 = sand.u32 %s90, 1
          %s195 = scalar_lea.vmem [#allocation7], %s194
          %197 = vsyncadd %s193, 0
          %s198 = scalar_lea.hbm %s2, %s24
          %s200 = sshll.u32 %s198, 4
          %s201 = int_to_ptr.hbm [resolvable:$true] %s200
          %s202 = sshll.u32 %s195, 4
          %s203 = int_to_ptr.vmem [resolvable:$true] %s202
          %205 = dma.hbm_to_vmem [thread:$0]  %s201, 16, %s203, %s193
        $region28: #{tpu_custom_call.1} parent=19 // pred_fallthru
          _
      $region20: #{tpu_custom_call.1} parent=5 // pred_fallthru
        _
      %p206 = scmp.le.s32.totalorder 1, %s16
      %p207 = scmp.lt.s32.totalorder %s16, 3
      %p208 = pnand %p206, %p207
      %p209 = pneg %p208
      // Predicated region
      $region29: #{tpu_custom_call.1} parent=5 // pred_check
        _
      $region30: #{tpu_custom_call.1} parent=5 // pred_check_branch
        %211 = sbr.rel (%p208) target = $region32
      $region31: #{tpu_custom_call.1} parent=5 // pred_region
        %s212 = ssub.s32 %s16, 1
        // Predicated region
        $region33: #{tpu_custom_call.1} parent=31 // pred_check
          %p213 = pneg %p54
        $region34: #{tpu_custom_call.1} parent=31 // pred_check_branch
          %215 = sbr.rel (%p213) target = $region36
        $region35: #{tpu_custom_call.1} parent=31 // pred_region
          %217 = dma.done [#allocation3], 256
        $region36: #{tpu_custom_call.1} parent=31 // pred_fallthru
          _
        %s218 = sand.u32 %s21, 1
        %s219 = scalar_lea.sflag [#allocation6], %s218
        %s220 = sand.u32 %s67, 1
        %s221 = smul.addr %s220, 256
        %s222 = scalar_lea.vmem [#allocation5], %s221
        // Predicated region
        $region37: #{tpu_custom_call.1} parent=31 // pred_check
          %p223 = pneg %p80
        $region38: #{tpu_custom_call.1} parent=31 // pred_check_branch
          %225 = sbr.rel (%p223) target = $region40
        $region39: #{tpu_custom_call.1} parent=31 // pred_region
          %227 = dma.done %s219, 4096
        $region40: #{tpu_custom_call.1} parent=31 // pred_fallthru
          _
        %s228 = sand.u32 %s21, 1
        %s229 = scalar_lea.sflag [#allocation6], %s228
        %s230 = sand.u32 %s93, 1
        %s231 = scalar_lea.vmem [#allocation7], %s230
        // Predicated region
        $region41: #{tpu_custom_call.1} parent=31 // pred_check
          %p232 = pneg %p106
        $region42: #{tpu_custom_call.1} parent=31 // pred_check_branch
          %234 = sbr.rel (%p232) target = $region44
        $region43: #{tpu_custom_call.1} parent=31 // pred_region
          %236 = dma.done %s229, 16
        $region44: #{tpu_custom_call.1} parent=31 // pred_fallthru
          _
        %p237 = pneg %p54
        %p238 = pneg %p51
        %s239 = sand.u32 %s21, 1
        %s240 = scalar_lea.sflag [#allocation6], %s239
        %s241 = sand.u32 %s67, 1
        %s242 = smul.addr %s241, 256
        %s243 = scalar_lea.vmem [#allocation5], %s242
        %p244 = pneg %p80
        %p245 = pneg %p77
        %s246 = sand.u32 %s21, 1
        %s247 = scalar_lea.sflag [#allocation6], %s246
        %s248 = sand.u32 %s93, 1
        %s249 = scalar_lea.vmem [#allocation7], %s248
        %p250 = pneg %p106
        %p251 = pneg %p103
        %p252 = pneg %p134
        %p253 = pneg %p131
        %s254 = sand.u32 %s121, 1
        %s255 = scalar_lea.sflag [#allocation4], %s254
        %s256 = sand.u32 %s121, 1
        %s257 = smul.addr %s256, 8
        %s258 = scalar_lea.vmem [#allocation8], %s257
        %v259 = vld [vmem:[#allocation2] sm:$0xff]
        %v260 = vld [vmem:[#allocation2 + $0x8] sm:$0xff]
        %v261 = vld [vmem:[%s222] sm:$0xff]
        %v262 = vld [vmem:[%s222 + $0x8] sm:$0xff]
        %v263 = vld [vmem:[%s222 + $0x10] sm:$0xff]
        %v264 = vld [vmem:[%s222 + $0x18] sm:$0xff]
        %v265 = vld [vmem:[%s222 + $0x20] sm:$0xff]
        %v266 = vld [vmem:[%s222 + $0x28] sm:$0xff]
        %v267 = vld [vmem:[%s222 + $0x30] sm:$0xff]
        %v268 = vld [vmem:[%s222 + $0x38] sm:$0xff]
        %v269 = vld [vmem:[%s222 + $0x40] sm:$0xff]
        %v270 = vld [vmem:[%s222 + $0x48] sm:$0xff]
        %v271 = vld [vmem:[%s222 + $0x50] sm:$0xff]
        %v272 = vld [vmem:[%s222 + $0x58] sm:$0xff]
        %v273 = vld [vmem:[%s222 + $0x60] sm:$0xff]
        %v274 = vld [vmem:[%s222 + $0x68] sm:$0xff]
        %v275 = vld [vmem:[%s222 + $0x70] sm:$0xff]
        %v276 = vld [vmem:[%s222 + $0x78] sm:$0xff]
        %v277 = vld [vmem:[%s222 + $0x80] sm:$0xff]
        %v278 = vld [vmem:[%s222 + $0x88] sm:$0xff]
        %v279 = vld [vmem:[%s222 + $0x90] sm:$0xff]
        %v280 = vld [vmem:[%s222 + $0x98] sm:$0xff]
        %v281 = vld [vmem:[%s222 + $0xa0] sm:$0xff]
        %v282 = vld [vmem:[%s222 + $0xa8] sm:$0xff]
        %v283 = vld [vmem:[%s222 + $0xb0] sm:$0xff]
        %v284 = vld [vmem:[%s222 + $0xb8] sm:$0xff]
        %v285 = vld [vmem:[%s222 + $0xc0] sm:$0xff]
        %v286 = vld [vmem:[%s222 + $0xc8] sm:$0xff]
        %v287 = vld [vmem:[%s222 + $0xd0] sm:$0xff]
        %v288 = vld [vmem:[%s222 + $0xd8] sm:$0xff]
        %v289 = vld [vmem:[%s222 + $0xe0] sm:$0xff]
        %v290 = vld [vmem:[%s222 + $0xe8] sm:$0xff]
        %v291 = vld [vmem:[%s222 + $0xf0] sm:$0xff]
        %v292 = vld [vmem:[%s222 + $0xf8] sm:$0xff]
        %v293 = vld [vmem:[%s231] sm:$0x1]
        %v295 = vperm.slane %v293, 0
        %297 = vmatpush.msra.mxu0 %v276
        %298 = vmatpush.msra.mxu0 %v275
        %299 = vmatpush.msra.mxu0 %v274
        %300 = vmatpush.msra.mxu0 %v273
        %301 = vmatpush.msra.mxu0 %v272
        %302 = vmatpush.msra.mxu0 %v271
        %303 = vmatpush.msra.mxu0 %v270
        %304 = vmatpush.msra.mxu0 %v269
        %305 = vmatpush.msra.mxu0 %v268
        %306 = vmatpush.msra.mxu0 %v267
        %307 = vmatpush.msra.mxu0 %v266
        %308 = vmatpush.msra.mxu0 %v265
        %309 = vmatpush.msra.mxu0 %v264
        %310 = vmatpush.msra.mxu0 %v263
        %311 = vmatpush.msra.mxu0 %v262
        %312 = vmatpush.msra.mxu0 %v261
        %313 = vmatmul.f32.gmra.mxu0 %v259
        %v314 = vpop.f32.mrf.mxu0
        %v315 = vadd.f32 %v295, %v314
        %316 = vdwg.mxu0
        %317 = vmatpush.msra.mxu0 %v292
        %318 = vmatpush.msra.mxu0 %v291
        %319 = vmatpush.msra.mxu0 %v290
        %320 = vmatpush.msra.mxu0 %v289
        %321 = vmatpush.msra.mxu0 %v288
        %322 = vmatpush.msra.mxu0 %v287
        %323 = vmatpush.msra.mxu0 %v286
        %324 = vmatpush.msra.mxu0 %v285
        %325 = vmatpush.msra.mxu0 %v284
        %326 = vmatpush.msra.mxu0 %v283
        %327 = vmatpush.msra.mxu0 %v282
        %328 = vmatpush.msra.mxu0 %v281
        %329 = vmatpush.msra.mxu0 %v280
        %330 = vmatpush.msra.mxu0 %v279
        %331 = vmatpush.msra.mxu0 %v278
        %332 = vmatpush.msra.mxu0 %v277
        %333 = vmatmul.f32.gmra.mxu0 %v260
        %v334 = vpop.f32.mrf.mxu0
        %v335 = vadd.f32 %v315, %v334
        %336 = vdwg.mxu0
        %v337 = vmax.f32 %v335, 0.0
        %338 = vst [vmem:[%s258] sm:$0xff] %v337
        %s339 = sand.u32 %s121, 1
        %s340 = scalar_lea.sflag [#allocation4], %s339
        %s341 = sand.u32 %s121, 1
        %s342 = smul.addr %s341, 8
        %s343 = scalar_lea.vmem [#allocation8], %s342
        // Predicated region
        $region45: #{tpu_custom_call.1} parent=31 // pred_check
          %p344 = pneg %p131
        $region46: #{tpu_custom_call.1} parent=31 // pred_check_branch
          %346 = sbr.rel (%p344) target = $region48
        $region47: #{tpu_custom_call.1} parent=31 // pred_region
          %348 = vsyncadd %s340, 0
          %s349 = smul.addr %s25, 2
          %s350 = sadd.s32 %s26, %s349
          %s351 = smul.addr %s350, 8
          %s352 = scalar_lea.hbm %s3, %s351
          %s354 = sshll.u32 %s343, 4
          %s355 = int_to_ptr.vmem [resolvable:$true] %s354
          %s356 = sshll.u32 %s352, 4
          %s357 = int_to_ptr.hbm [resolvable:$true] %s356
          %359 = dma.vmem_to_hbm [thread:$0]  %s355, 128, %s357, %s340
        $region48: #{tpu_custom_call.1} parent=31 // pred_fallthru
          _
      $region32: #{tpu_custom_call.1} parent=5 // pred_fallthru
        _
      %p360 = scmp.le.s32.totalorder 2, %s16
      // Predicated region
      $region49: #{tpu_custom_call.1} parent=5 // pred_check
        %p361 = pneg %p360
      $region50: #{tpu_custom_call.1} parent=5 // pred_check_branch
        %363 = sbr.rel (%p361) target = $region52
      $region51: #{tpu_custom_call.1} parent=5 // pred_region
        %s364 = ssub.s32 %s16, 2
        // Predicated region
        $region53: #{tpu_custom_call.1} parent=51 // pred_check
          %p365 = pneg %p137
        $region54: #{tpu_custom_call.1} parent=51 // pred_check_branch
          %367 = sbr.rel (%p365) target = $region56
        $region55: #{tpu_custom_call.1} parent=51 // pred_region
          %s368 = sand.u32 %s122, 1
          %s369 = scalar_lea.sflag [#allocation4], %s368
          %s370 = sand.u32 %s122, 1
          %s371 = smul.addr %s370, 8
          %s372 = scalar_lea.vmem [#allocation8], %s371
          %374 = dma.done %s369, 128
        $region56: #{tpu_custom_call.1} parent=51 // pred_fallthru
          _
      $region52: #{tpu_custom_call.1} parent=5 // pred_fallthru
        _
    $region6: #{tpu_custom_call.1} parent=1 // loop_footer
      %s20 = sadd.s32 1, %s16
    $region7: #{tpu_custom_call.1} parent=1 // loop_footer_branch
      %15 = sbr.rel target = $region3
    $region8: #{tpu_custom_call.1} parent=1 // loop_exit
      _
    %375 = vsyncpa [#allocation3], 1
    %s376 = scalar_lea.sflag [#allocation3], 1
    %377 = vsyncpa %s376, 1
    %378 = vsyncpa [#allocation6], 1
    %s379 = scalar_lea.sflag [#allocation6], 1
    %380 = vsyncpa %s379, 1
    %381 = vsyncpa [#allocation4], 1
    %s382 = scalar_lea.sflag [#allocation4], 1
    %383 = vsyncpa %s382, 1

</llo_original>
